<compile_context>
chip_gen: v7x
topology: tpu7x:2x2x1
jax: 0.10.0
libtpu: 0.0.40
codegen_flags: <defaults>
</compile_context>

<pallas_src>
import functools

import jax
import jax.numpy as jnp
from jax.experimental import pallas as pl
from jax.experimental.pallas import tpu as pltpu


# ----------------------------------------------------------------------------
# helpers
# ----------------------------------------------------------------------------
def _ru(x, m):
    return ((x + m - 1) // m) * m


def _pad2(x, m, n):
    if x.shape == (m, n):
        return x
    return jnp.pad(x, ((0, m - x.shape[0]), (0, n - x.shape[1])))


# ----------------------------------------------------------------------------
# Pallas kernels
# ----------------------------------------------------------------------------
def _mm_kernel(*refs, relu, has_res):
    if has_res:
        a_ref, b_ref, s_ref, c_ref, r_ref, o_ref, acc_ref = refs
    else:
        a_ref, b_ref, s_ref, c_ref, o_ref, acc_ref = refs
        r_ref = None

    @pl.when(pl.program_id(2) == 0)
    def _():
        acc_ref[...] = jnp.zeros_like(acc_ref)

    acc_ref[...] += jnp.dot(a_ref[...], b_ref[...],
                            preferred_element_type=jnp.float32)

    @pl.when(pl.program_id(2) == pl.num_programs(2) - 1)
    def _():
        r = acc_ref[...] * s_ref[...] + c_ref[...]
        if r_ref is not None:
            r = r + r_ref[...].astype(jnp.float32)
        if relu:
            r = jnp.maximum(r, 0.0)
        o_ref[...] = r.astype(o_ref.dtype)


def pallas_matmul(a, b, scale=None, bias=None, relu=False, residual=None,
                  out_dtype=jnp.float32):
    """out = relu_opt((a @ b) * scale[col] + bias[col] + residual).

    A/B are fed to the MXU in bf16; accumulation and the scale/bias/residual
    epilogue run in f32.  Tiles: tm adapts to the real M, tn/tk prefer 256/512.
    """
    M, K = a.shape
    K2, N = b.shape
    assert K == K2
    if scale is None:
        scale = jnp.ones((N,), jnp.float32)
    if bias is None:
        bias = jnp.zeros((N,), jnp.float32)

    tm = min(128, _ru(M, 8))
    Mp = _ru(M, tm)
    Np = _ru(N, 128)
    tn = 256 if Np % 256 == 0 else 128
    Kp = _ru(K, 128)
    tk = 512 if Kp % 512 == 0 else (256 if Kp % 256 == 0 else 128)

    a_p = _pad2(a, Mp, Kp).astype(jnp.bfloat16)
    b_p = _pad2(b, Kp, Np).astype(jnp.bfloat16)
    s_p = _pad2(scale.astype(jnp.float32).reshape(1, N), 1, Np)
    c_p = _pad2(bias.astype(jnp.float32).reshape(1, N), 1, Np)

    in_specs = [
        pl.BlockSpec((tm, tk), lambda i, j, k: (i, k)),
        pl.BlockSpec((tk, tn), lambda i, j, k: (k, j)),
        pl.BlockSpec((1, tn), lambda i, j, k: (0, j)),
        pl.BlockSpec((1, tn), lambda i, j, k: (0, j)),
    ]
    operands = [a_p, b_p, s_p, c_p]
    has_res = residual is not None
    if has_res:
        in_specs.append(pl.BlockSpec((tm, tn), lambda i, j, k: (i, j)))
        operands.append(_pad2(residual, Mp, Np))

    grid = (Mp // tm, Np // tn, Kp // tk)
    out = pl.pallas_call(
        functools.partial(_mm_kernel, relu=relu, has_res=has_res),
        out_shape=jax.ShapeDtypeStruct((Mp, Np), out_dtype),
        grid_spec=pltpu.PrefetchScalarGridSpec(
            num_scalar_prefetch=0,
            grid=grid,
            in_specs=in_specs,
            out_specs=pl.BlockSpec((tm, tn), lambda i, j, k: (i, j)),
            scratch_shapes=[pltpu.VMEM((tm, tn), jnp.float32)],
        ),
        compiler_params=pltpu.CompilerParams(
            dimension_semantics=("parallel", "parallel", "arbitrary")),
    )(*operands)
    return out[:M, :N]


def _gmm_kernel(a_ref, b_ref, s_ref, c_ref, o_ref, *, relu):
    r = jnp.dot(a_ref[...], b_ref[...], preferred_element_type=jnp.float32)
    r = r * s_ref[...] + c_ref[...]
    if relu:
        r = jnp.maximum(r, 0.0)
    o_ref[...] = r.astype(o_ref.dtype)


def pallas_grouped_matmul(patches, w, scale, bias, relu, groups,
                          out_dtype=jnp.bfloat16):
    """Grouped conv as a batched per-group matmul (no block-diagonal zeros).

    patches: (M, Cin*KH*KW) im2col, per-channel (kh, kw) inner order.
    w: torch layout (Cout, Cin/groups, KH, KW).  Grid is over groups; each
    grid step computes (M, Cpg*KH*KW) @ (Cpg*KH*KW, Cout/groups) on the MXU
    with the folded-BN (+ReLU) epilogue fused.
    """
    M, K = patches.shape
    Cout, Cpg, KH, KW = w.shape
    G = groups
    Kg = Cpg * KH * KW
    Ng = Cout // G
    assert K == G * Kg

    Mp = _ru(M, 8)
    A = patches.reshape(M, G, Kg).transpose(1, 0, 2)           # (G, M, Kg)
    if Mp != M:
        A = jnp.pad(A, ((0, 0), (0, Mp - M), (0, 0)))
    A = A.astype(jnp.bfloat16)
    Bm = w.reshape(G, Ng, Cpg, KH, KW).transpose(0, 2, 3, 4, 1)
    Bm = Bm.reshape(G, Kg, Ng).astype(jnp.bfloat16)            # (G, Kg, Ng)
    S = scale.astype(jnp.float32).reshape(G, 1, Ng)
    Cb = bias.astype(jnp.float32).reshape(G, 1, Ng)

    out = pl.pallas_call(
        functools.partial(_gmm_kernel, relu=relu),
        out_shape=jax.ShapeDtypeStruct((G, Mp, Ng), out_dtype),
        grid_spec=pltpu.PrefetchScalarGridSpec(
            num_scalar_prefetch=0,
            grid=(G,),
            in_specs=[
                pl.BlockSpec((None, Mp, Kg), lambda g: (g, 0, 0)),
                pl.BlockSpec((None, Kg, Ng), lambda g: (g, 0, 0)),
                pl.BlockSpec((None, 1, Ng), lambda g: (g, 0, 0)),
                pl.BlockSpec((None, 1, Ng), lambda g: (g, 0, 0)),
            ],
            out_specs=pl.BlockSpec((None, Mp, Ng), lambda g: (g, 0, 0)),
        ),
        compiler_params=pltpu.CompilerParams(
            dimension_semantics=("parallel",)),
    )(A, Bm, S, Cb)
    out = out.transpose(1, 0, 2).reshape(Mp, Cout)
    return out[:M]


def _max9_kernel(x_ref, o_ref):
    m = x_ref[0]
    for i in range(1, x_ref.shape[0]):
        m = jnp.maximum(m, x_ref[i])
    o_ref[...] = m


def pallas_maxpool_3x3_s2(x):
    """3x3 / stride-2 / pad-1 max pool on NHWC, done on a lane-dense (*,128)
    flattened layout so stores are full-width."""
    N, H, W, C = x.shape
    neg = float(jnp.finfo(x.dtype).min)
    xp = jnp.pad(x, ((0, 0), (1, 1), (1, 1), (0, 0)), constant_values=neg)
    OH = (H + 2 - 3) // 2 + 1
    OW = (W + 2 - 3) // 2 + 1
    slices = [xp[:, i:i + 2 * OH:2, j:j + 2 * OW:2, :]
              for i in range(3) for j in range(3)]
    stacked = jnp.stack(slices, axis=0).reshape(9, -1)    # (9, N*OH*OW*C)
    total = stacked.shape[1]

    R0 = pl.cdiv(total, 128)
    tr = min(1024, _ru(R0, 8))
    Rp = _ru(R0, tr)
    Tp = Rp * 128
    if Tp != total:
        stacked = jnp.pad(stacked, ((0, 0), (0, Tp - total)),
                          constant_values=neg)
    stacked = stacked.reshape(9, Rp, 128)

    out = pl.pallas_call(
        _max9_kernel,
        out_shape=jax.ShapeDtypeStruct((Rp, 128), x.dtype),
        grid_spec=pltpu.PrefetchScalarGridSpec(
            num_scalar_prefetch=0,
            grid=(Rp // tr,),
            in_specs=[pl.BlockSpec((9, tr, 128), lambda i: (0, i, 0))],
            out_specs=pl.BlockSpec((tr, 128), lambda i: (i, 0)),
        ),
        compiler_params=pltpu.CompilerParams(
            dimension_semantics=("parallel",)),
    )(stacked)
    return out.reshape(-1)[:total].reshape(N, OH, OW, C)


def _lstm_cell_kernel(g_ref, c_ref, h_out_ref, c_out_ref):
    Hd = c_ref.shape[1]
    g = g_ref[...]
    i = jax.nn.sigmoid(g[:, 0:Hd])
    f = jax.nn.sigmoid(g[:, Hd:2 * Hd])
    gg = jnp.tanh(g[:, 2 * Hd:3 * Hd])
    o = jax.nn.sigmoid(g[:, 3 * Hd:4 * Hd])
    c_new = f * c_ref[...] + i * gg
    h_out_ref[...] = o * jnp.tanh(c_new)
    c_out_ref[...] = c_new


def pallas_lstm_cell(gates, c):
    Bl, G4 = gates.shape
    Hd = G4 // 4
    Bp = _ru(Bl, 8)
    g_p = _pad2(gates, Bp, G4)
    c_p = _pad2(c, Bp, Hd)
    h_new, c_new = pl.pallas_call(
        _lstm_cell_kernel,
        out_shape=(jax.ShapeDtypeStruct((Bp, Hd), jnp.float32),
                   jax.ShapeDtypeStruct((Bp, Hd), jnp.float32)),
    )(g_p, c_p)
    return h_new[:Bl], c_new[:Bl]


# ----------------------------------------------------------------------------
# JAX glue: im2col, BN folding
# ----------------------------------------------------------------------------
def extract_patches(x, kh, kw, stride, pad):
    """x: (N,H,W,C) -> (N,OH,OW,C*kh*kw), feature order (C, kh, kw)."""
    N, H, W, C = x.shape
    xp = jnp.pad(x, ((0, 0), (pad, pad), (pad, pad), (0, 0)))
    OH = (H + 2 * pad - kh) // stride + 1
    OW = (W + 2 * pad - kw) // stride + 1
    slices = []
    for i in range(kh):
        for j in range(kw):
            slices.append(xp[:, i:i + stride * OH:stride,
                             j:j + stride * OW:stride, :])
    p = jnp.stack(slices, axis=3)                 # (N, OH, OW, kh*kw, C)
    p = jnp.transpose(p, (0, 1, 2, 4, 3))         # (N, OH, OW, C, kh*kw)
    return p.reshape(N, OH, OW, C * kh * kw), OH, OW


def fold_bn(bn, eps=1e-5):
    scale = bn["gamma"] / jnp.sqrt(bn["var"] + eps)
    bias = bn["beta"] - bn["mean"] * scale
    return scale, bias


def conv_bn(x, w, bn, stride, pad, relu, groups=1, residual=None,
            out_dtype=jnp.bfloat16):
    """x: (N,H,W,C) NHWC; w: torch layout (Cout, Cin/groups, KH, KW)."""
    N, H, W, C = x.shape
    Cout, _, KH, KW = w.shape
    scale, bias = fold_bn(bn)
    res2d = None if residual is None else residual.reshape(-1, Cout)
    if KH == 1 and KW == 1 and pad == 0 and groups == 1:
        xs = x[:, ::stride, ::stride, :]
        OH, OW = xs.shape[1], xs.shape[2]
        y = pallas_matmul(xs.reshape(-1, C), w.reshape(Cout, C).T,
                          scale, bias, relu=relu, residual=res2d,
                          out_dtype=out_dtype)
    else:
        p4, OH, OW = extract_patches(x, KH, KW, stride, pad)
        patches = p4.reshape(-1, C * KH * KW)
        if groups == 1:
            y = pallas_matmul(patches, w.reshape(Cout, C * KH * KW).T,
                              scale, bias, relu=relu, residual=res2d,
                              out_dtype=out_dtype)
        else:
            y = pallas_grouped_matmul(patches, w, scale, bias, relu, groups,
                                      out_dtype=out_dtype)
    return y.reshape(N, OH, OW, Cout)


# ----------------------------------------------------------------------------
# Parameter construction (deterministic synthetic init)
# ----------------------------------------------------------------------------
class Rng:
    def __init__(self, key):
        self.key = key

    def next(self):
        self.key, k = jax.random.split(self.key)
        return k


def conv_w(rng, cout, cin_per_group, kh, kw):
    fan_in = cin_per_group * kh * kw
    std = (2.0 / fan_in) ** 0.5
    return std * jax.random.normal(rng.next(), (cout, cin_per_group, kh, kw),
                                   jnp.float32)


def bn_params(rng, c):
    return dict(
        gamma=1.0 + 0.1 * jax.random.normal(rng.next(), (c,), jnp.float32),
        beta=0.1 * jax.random.normal(rng.next(), (c,), jnp.float32),
        mean=0.1 * jax.random.normal(rng.next(), (c,), jnp.float32),
        var=jnp.abs(1.0 + 0.1 * jax.random.normal(rng.next(), (c,),
                                                  jnp.float32)),
    )


def build_params(rng, num_classes, latent_dim=2048, hidden_dim=2048):
    params = {"conv1_w": conv_w(rng, 64, 3, 7, 7), "bn1": bn_params(rng, 64)}
    inplanes = 64
    cfg = [(64, 3, 1), (128, 4, 2), (256, 6, 2), (512, 3, 2)]
    layers = []
    for planes, nblocks, stride in cfg:
        blocks = []
        for bi in range(nblocks):
            s = stride if bi == 0 else 1
            width = planes * 2            # resnext50_32x4d: base_width=4, g=32
            outc = planes * 4
            bp = dict(
                stride=s,
                conv1_w=conv_w(rng, width, inplanes, 1, 1),
                bn1=bn_params(rng, width),
                conv2_w=conv_w(rng, width, width // 32, 3, 3),
                bn2=bn_params(rng, width),
                conv3_w=conv_w(rng, outc, width, 1, 1),
                bn3=bn_params(rng, outc),
            )
            if s != 1 or inplanes != outc:
                bp["down_w"] = conv_w(rng, outc, inplanes, 1, 1)
                bp["down_bn"] = bn_params(rng, outc)
            blocks.append(bp)
            inplanes = outc
        layers.append(blocks)
    params["layers"] = layers

    # nn.LSTM(latent_dim, hidden_dim, lstm_layers, bidirectional) -> the 4th
    # positional arg is `bias`, so this LSTM has NO biases.
    k = 1.0 / (hidden_dim ** 0.5)
    params["lstm_w_ih"] = jax.random.uniform(
        rng.next(), (4 * hidden_dim, latent_dim), jnp.float32, -k, k)
    params["lstm_w_hh"] = jax.random.uniform(
        rng.next(), (4 * hidden_dim, hidden_dim), jnp.float32, -k, k)

    kf = 1.0 / (2048 ** 0.5)
    params["fc_w"] = jax.random.uniform(
        rng.next(), (num_classes, 2048), jnp.float32, -kf, kf)
    params["fc_b"] = jax.random.uniform(
        rng.next(), (num_classes,), jnp.float32, -kf, kf)
    return params


# ----------------------------------------------------------------------------
# Forward pass
# ----------------------------------------------------------------------------
def bottleneck(x, bp):
    out = conv_bn(x, bp["conv1_w"], bp["bn1"], 1, 0, relu=True)
    out = conv_bn(out, bp["conv2_w"], bp["bn2"], bp["stride"], 1,
                  relu=True, groups=32)
    if "down_w" in bp:
        identity = conv_bn(x, bp["down_w"], bp["down_bn"], bp["stride"], 0,
                           relu=False)
    else:
        identity = x
    # conv3 + BN + residual add + ReLU fused in one matmul epilogue.
    out = conv_bn(out, bp["conv3_w"], bp["bn3"], 1, 0, relu=True,
                  residual=identity)
    return out


def model1_forward(x, params):
    B, T, C, H, W = x.shape
    xf = x.reshape(B * T, C, H, W)
    y = jnp.transpose(xf, (0, 2, 3, 1)).astype(jnp.bfloat16)   # NCHW -> NHWC

    # ResNeXt50 backbone (children[:-2]); activations kept in bf16.
    y = conv_bn(y, params["conv1_w"], params["bn1"], stride=2, pad=3, relu=True)
    y = pallas_maxpool_3x3_s2(y)
    for blocks in params["layers"]:
        for bp in blocks:
            y = bottleneck(y, bp)
    fmap_nhwc = y                                  # (B*T, Hf, Wf, 2048)
    Cf = fmap_nhwc.shape[-1]

    # AdaptiveAvgPool2d(1): a tiny (Hf*Wf)-element mean; done directly in f32.
    pooled = jnp.mean(fmap_nhwc.astype(jnp.float32), axis=(1, 2))   # (B*T, Cf)

    # LSTM with the original module's batch_first=False semantics: dim0 of the
    # pooled (B, T, Cf) tensor (= B) is the sequence axis, T acts as batch.
    # The LSTM has no biases.  x-path gates for all timesteps are computed in
    # one matmul; only h @ W_hh^T streams per recurrent step (bf16 weights),
    # with the x-path gates added as a fused residual in that matmul.
    Hd = params["lstm_w_hh"].shape[1]
    w_ih_t = params["lstm_w_ih"].T.astype(jnp.bfloat16)   # (2048, 8192)
    w_hh_t = params["lstm_w_hh"].T.astype(jnp.bfloat16)   # (2048, 8192)
    gx_all = pallas_matmul(pooled, w_ih_t, out_dtype=jnp.float32)
    gx_all = gx_all.reshape(B, T, 4 * Hd)

    h = jnp.zeros((T, Hd), jnp.float32)
    c = jnp.zeros((T, Hd), jnp.float32)
    outs = []
    for t in range(B):
        gates = pallas_matmul(h, w_hh_t, residual=gx_all[t],
                              out_dtype=jnp.float32)
        h, c = pallas_lstm_cell(gates, c)
        outs.append(h)
    x_lstm = jnp.stack(outs, axis=0)               # (B, T, 2048)
    last = x_lstm[:, -1, :]                        # (B, 2048)

    # Dropout(0.4): identity in eval mode.  TODO(synk): train-mode dropout.
    logits = pallas_matmul(last, params["fc_w"].T, bias=params["fc_b"],
                           out_dtype=jnp.float32)

    fmap = jnp.transpose(fmap_nhwc, (0, 3, 1, 2)).astype(jnp.float32)  # NCHW
    return fmap, logits


# ----------------------------------------------------------------------------
if __name__ == "__main__":
    num_classes = 5
    B, T, C, H, W = 2, 3, 3, 64, 64

    rng = Rng(jax.random.PRNGKey(0))
    params = build_params(rng, num_classes)
    x = jax.random.normal(jax.random.PRNGKey(0), (B, T, C, H, W), jnp.float32)

    fmap, logits = model1_forward(x, params)
    fmap = jax.block_until_ready(fmap)
    logits = jax.block_until_ready(logits)

    assert fmap.shape == (B * T, 2048, H // 32, W // 32), fmap.shape
    assert logits.shape == (B, num_classes), logits.shape
    assert bool(jnp.all(jnp.isfinite(logits)))
    print("KERNEL_OK")
</pallas_src>

<mosaic_0001>
module attributes {stable_mosaic.version = 11 : i64} {
  func.func @_mm_kernel(%arg0: i32, %arg1: i32, %arg2: i32, %arg3: memref<128x256xbf16, #tpu.memory_space<vmem>>, %arg4: memref<256x128xbf16, #tpu.memory_space<vmem>>, %arg5: memref<1x128xf32, #tpu.memory_space<vmem>>, %arg6: memref<1x128xf32, #tpu.memory_space<vmem>>, %arg7: memref<128x128xbf16, #tpu.memory_space<vmem>>, %arg8: memref<128x128xf32, #tpu.memory_space<vmem>>) attributes {dimension_semantics = [#tpu.dimension_semantics<parallel>, #tpu.dimension_semantics<parallel>, #tpu.dimension_semantics<arbitrary>], iteration_bounds = array<i64: 48, 1, 1>, scalar_prefetch = 0 : i64, scratch_operands = 1 : i64, tpu.core_type = #tpu.core_type<tc>, window_params = [{transform_indices = @transform_0, window_bounds = array<i64: 128, 256>}, {transform_indices = @transform_1, window_bounds = array<i64: 256, 128>}, {transform_indices = @transform_2, window_bounds = array<i64: 1, 128>}, {transform_indices = @transform_3, window_bounds = array<i64: 1, 128>}, {transform_indices = @transform_4, window_bounds = array<i64: 128, 128>}]} {
    %c0_i32 = arith.constant 0 : i32
    %0 = arith.cmpi eq, %arg2, %c0_i32 : i32
    %1 = arith.extui %0 : i1 to i32
    %c0_i32_0 = arith.constant 0 : i32
    %2 = arith.cmpi ne, %1, %c0_i32_0 : i32
    scf.if %2 {
      %cst_10 = arith.constant 0.000000e+00 : f32
      %12 = vector.broadcast %cst_10 : f32 to vector<128x128xf32>
      %c0_11 = arith.constant 0 : index
      %c0_12 = arith.constant 0 : index
      %13 = vector.load %arg8[%c0_11, %c0_12] : memref<128x128xf32, #tpu.memory_space<vmem>>, vector<128x128xf32>
      tpu.vector_store %arg8[%c0_11, %c0_12], %12 {strides = array<i32>} : memref<128x128xf32, #tpu.memory_space<vmem>>, vector<128x128xf32>,
    } else {
    }
    %c0 = arith.constant 0 : index
    %c0_1 = arith.constant 0 : index
    %3 = vector.load %arg8[%c0, %c0_1] : memref<128x128xf32, #tpu.memory_space<vmem>>, vector<128x128xf32>
    %c0_2 = arith.constant 0 : index
    %c0_3 = arith.constant 0 : index
    %4 = vector.load %arg3[%c0_2, %c0_3] : memref<128x256xbf16, #tpu.memory_space<vmem>>, vector<128x256xbf16>
    %c0_4 = arith.constant 0 : index
    %c0_5 = arith.constant 0 : index
    %5 = vector.load %arg4[%c0_4, %c0_5] : memref<256x128xbf16, #tpu.memory_space<vmem>>, vector<256x128xbf16>
    %cst = arith.constant dense<0.000000e+00> : vector<128x128xf32>
    %6 = tpu.matmul %4, %5, %cst {dimension_numbers = #tpu.dot_dimension_numbers<[1], [0], [0], [1], [0, 0, 1, 1], [], []>} : vector<128x256xbf16>, vector<256x128xbf16>, vector<128x128xf32> -> vector<128x128xf32>
    %7 = arith.addf %3, %6 : vector<128x128xf32>
    %c0_6 = arith.constant 0 : index
    %c0_7 = arith.constant 0 : index
    %8 = vector.load %arg8[%c0_6, %c0_7] : memref<128x128xf32, #tpu.memory_space<vmem>>, vector<128x128xf32>
    tpu.vector_store %arg8[%c0_6, %c0_7], %7 {strides = array<i32>} : memref<128x128xf32, #tpu.memory_space<vmem>>, vector<128x128xf32>,
    %c0_i32_8 = arith.constant 0 : i32
    %9 = arith.cmpi eq, %arg2, %c0_i32_8 : i32
    %10 = arith.extui %9 : i1 to i32
    %c0_i32_9 = arith.constant 0 : i32
    %11 = arith.cmpi ne, %10, %c0_i32_9 : i32
    scf.if %11 {
      %c0_10 = arith.constant 0 : index
      %c0_11 = arith.constant 0 : index
      %12 = vector.load %arg8[%c0_10, %c0_11] : memref<128x128xf32, #tpu.memory_space<vmem>>, vector<128x128xf32>
      %c0_12 = arith.constant 0 : index
      %c0_13 = arith.constant 0 : index
      %13 = vector.load %arg5[%c0_12, %c0_13] : memref<1x128xf32, #tpu.memory_space<vmem>>, vector<1x128xf32>
      %14 = vector.broadcast %13 : vector<1x128xf32> to vector<128x128xf32>
      %15 = arith.mulf %12, %14 : vector<128x128xf32>
      %c0_14 = arith.constant 0 : index
      %c0_15 = arith.constant 0 : index
      %16 = vector.load %arg6[%c0_14, %c0_15] : memref<1x128xf32, #tpu.memory_space<vmem>>, vector<1x128xf32>
      %17 = vector.broadcast %16 : vector<1x128xf32> to vector<128x128xf32>
      %18 = arith.addf %15, %17 : vector<128x128xf32>
      %cst_16 = arith.constant 0.000000e+00 : f32
      %19 = vector.broadcast %cst_16 : f32 to vector<128x128xf32>
      %20 = arith.maximumf %18, %19 : vector<128x128xf32>
      %21 = arith.truncf %20 : vector<128x128xf32> to vector<128x128xbf16>
      %c0_17 = arith.constant 0 : index
      %c0_18 = arith.constant 0 : index
      %22 = vector.load %arg7[%c0_17, %c0_18] : memref<128x128xbf16, #tpu.memory_space<vmem>>, vector<128x128xbf16>
      tpu.vector_store %arg7[%c0_17, %c0_18], %21 {strides = array<i32>} : memref<128x128xbf16, #tpu.memory_space<vmem>>, vector<128x128xbf16>,
    } else {
    }
    return
  }
  func.func @transform_0(%arg0: i32, %arg1: i32, %arg2: i32) -> (i32, i32) {
    %c0_i32 = arith.constant 0 : i32
    return %arg0, %arg2 : i32, i32
  }
  func.func @transform_1(%arg0: i32, %arg1: i32, %arg2: i32) -> (i32, i32) {
    %c0_i32 = arith.constant 0 : i32
    return %arg2, %arg1 : i32, i32
  }
  func.func @transform_2(%arg0: i32, %arg1: i32, %arg2: i32) -> (i32, i32) {
    %c0_i32 = arith.constant 0 : i32
    %c0_i32_0 = arith.constant 0 : i32
    return %c0_i32, %arg1 : i32, i32
  }
  func.func @transform_3(%arg0: i32, %arg1: i32, %arg2: i32) -> (i32, i32) {
    %c0_i32 = arith.constant 0 : i32
    %c0_i32_0 = arith.constant 0 : i32
    return %c0_i32, %arg1 : i32, i32
  }
  func.func @transform_4(%arg0: i32, %arg1: i32, %arg2: i32) -> (i32, i32) {
    %c0_i32 = arith.constant 0 : i32
    return %arg0, %arg1 : i32, i32
  }
}

</mosaic_0001>

<llo_original>
// kernel: tpu_custom_call.1
$region0: #{tpu_custom_call.1}
  #allocation0 [shape = 'u32[]', space=smem, size = 0x4, offset = 0x4, fixed_abs, tag = 'smem constant byte address 0x4 - core index']
  #allocation1 [shape = 'u32[144,128]{1,0:T(1,128)}', space=vmem, size = 0x12000, scoped, tag = 'internal scratch']
  #allocation2 [shape = 'f32[128,128]{1,0:T(8,128)}', space=vmem, size = 0x10000, scoped, tag = 'scratch operand']
  %s0 = inlined_call_operand.hbm [shape: bf16[6144,256], index: 0, kind: input, shape index: {}]
  %s1 = inlined_call_operand.hbm [shape: bf16[256,128], index: 1, kind: input, shape index: {}]
  %s2 = inlined_call_operand.hbm [shape: f32[1,128], index: 2, kind: input, shape index: {}]
  %s3 = inlined_call_operand.hbm [shape: f32[1,128], index: 3, kind: input, shape index: {}]
  %s4 = inlined_call_operand.hbm [shape: bf16[6144,128], index: 4, kind: output, shape index: {}]
  %s5 = sld [smem:[#allocation0]]
  $region73: #{tpu_custom_call.1} parent=0
    _
  %s7 = ssub.s32 1, %s5
  %s8 = scalar_select 0, %s7, %s5
  $region1: #{tpu_custom_call.1} parent=0
    #allocation3 [shape = 'u8[131072]{0}', space=vmem, size = 0x20000, scoped, tag = 'input window, operand 0']
    #allocation4 [shape = 's32[2]{0}', space=sflag, size = 0x8, scoped, tag = 'scoped memory for tpu_custom_call.1']
    #allocation5 [shape = 's32[2]{0}', space=sflag, size = 0x8, scoped, tag = 'scoped memory for tpu_custom_call.1']
    #allocation6 [shape = 'u8[65536]{0}', space=vmem, size = 0x10000, scoped, tag = 'input window, operand 1, single buffered']
    #allocation7 [shape = 's32[1]{0}', space=sflag, size = 0x4, scoped, tag = 'scoped memory for tpu_custom_call.1']
    #allocation8 [shape = 'u8[512]{0}', space=vmem, size = 0x400, scoped, tag = 'input window, operand 2, single buffered']
    #allocation9 [shape = 'u8[512]{0}', space=vmem, size = 0x400, scoped, tag = 'input window, operand 3, single buffered']
    #allocation10 [shape = 's32[1]{0}', space=sflag, size = 0x4, scoped, tag = 'scoped memory for tpu_custom_call.1']
    #allocation11 [shape = 'u8[65536]{0}', space=vmem, size = 0x10000, scoped, tag = 'output window, operand 0']
    %9 = vsyncpa [#allocation4], 0
    %s10 = scalar_lea.sflag [#allocation4], 1
    %11 = vsyncpa %s10, 0
    %12 = vsyncpa [#allocation7], 0
    %13 = vsyncpa [#allocation10], 0
    %14 = vsyncpa [#allocation5], 0
    %s15 = scalar_lea.sflag [#allocation5], 1
    %16 = vsyncpa %s15, 0
    loop: start=0, step=1, limit=50
    $region2: #{tpu_custom_call.1} parent=1 // loop_pre_header
      _
    $region3: #{tpu_custom_call.1} parent=1 // loop_header
      %s18 = sphi 0, %s22
      %p19 = scmp.ge.s32.totalorder %s18, 50
      %s25 = sphi 0, %s44
      %s26 = sphi 0, %s40
      %s27 = sphi 0, %s36
      %s28 = sphi 0, %s25
      %s29 = sphi 0, %s26
      %s30 = sphi 0, %s27
      %s31 = sphi 0, %s28
      %s32 = sphi 0, %s29
      %s33 = sphi 0, %s30
      %s49 = sphi 0, %s51
      %s52 = sphi 0, %s49
      %s53 = sphi 0, %s52
      %s69 = sphi 0, %s53
      %s77 = sphi 0, %s79
      %s80 = sphi 0, %s77
      %s81 = sphi 0, %s80
      %s97 = sphi 0, %s81
      %s103 = sphi 0, %s105
      %s106 = sphi 0, %s103
      %s107 = sphi 0, %s106
      %s123 = sphi 0, %s107
      %s129 = sphi 0, %s131
      %s132 = sphi 0, %s129
      %s133 = sphi 0, %s132
      %s149 = sphi 0, %s133
      %s157 = sphi 0, %s159
      %s160 = sphi 0, %s157
      %s161 = sphi 0, %s160
      %s177 = sphi 0, %s161
    $region4: #{tpu_custom_call.1} parent=1 // loop_header_branch
      %21 = sbr.rel (%p19) target = $region8
    $region5: #{tpu_custom_call.1} parent=1 // loop_body
      %s23 = ssub.s32 %s18, 1
      %s24 = ssub.s32 %s18, 2
      %s34 = sadd.s32 1, %s27
      %p35 = scmp.ge.s32.totalorder %s34, 1
      %s36 = scalar_select %p35, 0, %s34
      %s37 = sadd.s32 1, %s26
      %s38 = scalar_select %p35, %s37, %s26
      %p39 = scmp.ge.s32.totalorder %s38, 1
      %s40 = scalar_select %p39, 0, %s38
      %s41 = sadd.s32 1, %s25
      %s42 = scalar_select %p39, %s41, %s25
      %p43 = scmp.ge.s32.totalorder %s42, 48
      %s44 = scalar_select %p43, 0, %s42
      %s45 = ssub.s32 %s25, %s44
      %s46 = ssub.s32 %s27, %s36
      %s47 = sor.u32 %s45, %s46
      %p48 = scmp.eq.s32.totalorder %s47, 0
      %s50 = sadd.s32 %s49, 1
      %s51 = scalar_select %p48, %s49, %s50
      %p54 = pneg %p48
      %p55 = scmp.eq.s32.totalorder %s18, 47
      %p56 = por %p54, %p55
      %p57 = scmp.ne.s32.totalorder %s49, %s52
      %p58 = scmp.eq.s32.totalorder %s18, 0
      %p59 = por %p57, %p58
      %p60 = scmp.ne.s32.totalorder %s49, %s52
      %p61 = scmp.eq.s32.totalorder %s23, 47
      %p62 = por %p60, %p61
      %p63 = scmp.ne.s32.totalorder %s52, %s53
      %p64 = scmp.eq.s32.totalorder %s23, 0
      %p65 = por %p63, %p64
      %p66 = scmp.ne.s32.totalorder %s52, %s53
      %p67 = scmp.eq.s32.totalorder %s24, 47
      %p68 = por %p66, %p67
      %p70 = scmp.ne.s32.totalorder %s53, %s69
      %p71 = scmp.eq.s32.totalorder %s24, 0
      %p72 = por %p70, %p71
      %s73 = ssub.s32 %s27, %s36
      %s74 = ssub.s32 %s26, %s40
      %s75 = sor.u32 %s73, %s74
      %p76 = scmp.eq.s32.totalorder %s75, 0
      %s78 = sadd.s32 %s77, 1
      %s79 = scalar_select %p76, %s77, %s78
      %p82 = pneg %p76
      %p83 = scmp.eq.s32.totalorder %s18, 47
      %p84 = por %p82, %p83
      %p85 = scmp.ne.s32.totalorder %s77, %s80
      %p86 = scmp.eq.s32.totalorder %s18, 0
      %p87 = por %p85, %p86
      %p88 = scmp.ne.s32.totalorder %s77, %s80
      %p89 = scmp.eq.s32.totalorder %s23, 47
      %p90 = por %p88, %p89
      %p91 = scmp.ne.s32.totalorder %s80, %s81
      %p92 = scmp.eq.s32.totalorder %s23, 0
      %p93 = por %p91, %p92
      %p94 = scmp.ne.s32.totalorder %s80, %s81
      %p95 = scmp.eq.s32.totalorder %s24, 47
      %p96 = por %p94, %p95
      %p98 = scmp.ne.s32.totalorder %s81, %s97
      %p99 = scmp.eq.s32.totalorder %s24, 0
      %p100 = por %p98, %p99
      %s101 = ssub.s32 %s26, %s40
      %p102 = scmp.eq.s32.totalorder %s101, 0
      %s104 = sadd.s32 %s103, 1
      %s105 = scalar_select %p102, %s103, %s104
      %p108 = pneg %p102
      %p109 = scmp.eq.s32.totalorder %s18, 47
      %p110 = por %p108, %p109
      %p111 = scmp.ne.s32.totalorder %s103, %s106
      %p112 = scmp.eq.s32.totalorder %s18, 0
      %p113 = por %p111, %p112
      %p114 = scmp.ne.s32.totalorder %s103, %s106
      %p115 = scmp.eq.s32.totalorder %s23, 47
      %p116 = por %p114, %p115
      %p117 = scmp.ne.s32.totalorder %s106, %s107
      %p118 = scmp.eq.s32.totalorder %s23, 0
      %p119 = por %p117, %p118
      %p120 = scmp.ne.s32.totalorder %s106, %s107
      %p121 = scmp.eq.s32.totalorder %s24, 47
      %p122 = por %p120, %p121
      %p124 = scmp.ne.s32.totalorder %s107, %s123
      %p125 = scmp.eq.s32.totalorder %s24, 0
      %p126 = por %p124, %p125
      %s127 = ssub.s32 %s26, %s40
      %p128 = scmp.eq.s32.totalorder %s127, 0
      %s130 = sadd.s32 %s129, 1
      %s131 = scalar_select %p128, %s129, %s130
      %p134 = pneg %p128
      %p135 = scmp.eq.s32.totalorder %s18, 47
      %p136 = por %p134, %p135
      %p137 = scmp.ne.s32.totalorder %s129, %s132
      %p138 = scmp.eq.s32.totalorder %s18, 0
      %p139 = por %p137, %p138
      %p140 = scmp.ne.s32.totalorder %s129, %s132
      %p141 = scmp.eq.s32.totalorder %s23, 47
      %p142 = por %p140, %p141
      %p143 = scmp.ne.s32.totalorder %s132, %s133
      %p144 = scmp.eq.s32.totalorder %s23, 0
      %p145 = por %p143, %p144
      %p146 = scmp.ne.s32.totalorder %s132, %s133
      %p147 = scmp.eq.s32.totalorder %s24, 47
      %p148 = por %p146, %p147
      %p150 = scmp.ne.s32.totalorder %s133, %s149
      %p151 = scmp.eq.s32.totalorder %s24, 0
      %p152 = por %p150, %p151
      %s153 = ssub.s32 %s25, %s44
      %s154 = ssub.s32 %s26, %s40
      %s155 = sor.u32 %s153, %s154
      %p156 = scmp.eq.s32.totalorder %s155, 0
      %s158 = sadd.s32 %s157, 1
      %s159 = scalar_select %p156, %s157, %s158
      %p162 = pneg %p156
      %p163 = scmp.eq.s32.totalorder %s18, 47
      %p164 = por %p162, %p163
      %p165 = scmp.ne.s32.totalorder %s157, %s160
      %p166 = scmp.eq.s32.totalorder %s18, 0
      %p167 = por %p165, %p166
      %p168 = scmp.ne.s32.totalorder %s157, %s160
      %p169 = scmp.eq.s32.totalorder %s23, 47
      %p170 = por %p168, %p169
      %p171 = scmp.ne.s32.totalorder %s160, %s161
      %p172 = scmp.eq.s32.totalorder %s23, 0
      %p173 = por %p171, %p172
      %p174 = scmp.ne.s32.totalorder %s160, %s161
      %p175 = scmp.eq.s32.totalorder %s24, 47
      %p176 = por %p174, %p175
      %p178 = scmp.ne.s32.totalorder %s161, %s177
      %p179 = scmp.eq.s32.totalorder %s24, 0
      %p180 = por %p178, %p179
      %p181 = scmp.le.s32.totalorder 1, %s18
      %p182 = scmp.lt.s32.totalorder %s18, 49
      %p183 = pnand %p181, %p182
      %p184 = pneg %p183
      // Predicated region
      $region9: #{tpu_custom_call.1} parent=5 // pred_check
        _
      $region10: #{tpu_custom_call.1} parent=5 // pred_check_branch
        %186 = sbr.rel (%p183) target = $region12
      $region11: #{tpu_custom_call.1} parent=5 // pred_region
        %s187 = ssub.s32 %s18, 1
        // Predicated region
        $region13: #{tpu_custom_call.1} parent=11 // pred_check
          %p188 = pneg %p93
        $region14: #{tpu_custom_call.1} parent=11 // pred_check_branch
          %190 = sbr.rel (%p188) target = $region16
        $region15: #{tpu_custom_call.1} parent=11 // pred_region
          %s191 = smul.u32 32, %s30
          %s193 = ssub.s32 2048, 2048
          %194 = vsyncadd [#allocation7], %s193
          %s195 = sadd.s32 %s29, %s191
          %s196 = smul.addr %s195, 64
          %s197 = scalar_lea.hbm %s1, %s196
          %s198 = sshll.u32 [#allocation6], 4
          %s199 = int_to_ptr.vmem [resolvable:$true] %s198
          %204 = dma.hbm_to_vmem [thread:$0]  %s197, 2048, %s199, [#allocation7], 64, 64, 4
        $region16: #{tpu_custom_call.1} parent=11 // pred_fallthru
          _
        // Predicated region
        $region17: #{tpu_custom_call.1} parent=11 // pred_check
          %p205 = pneg %p119
        $region18: #{tpu_custom_call.1} parent=11 // pred_check_branch
          %207 = sbr.rel (%p205) target = $region20
        $region19: #{tpu_custom_call.1} parent=11 // pred_region
          %s209 = ssub.s32 16, 16
          %210 = vsyncadd [#allocation7], %s209
          %s211 = smul.addr %s29, 16
          %s212 = scalar_lea.hbm %s2, %s211
          %s214 = sshll.u32 [#allocation8], 4
          %s215 = int_to_ptr.vmem [resolvable:$true] %s214
          %217 = dma.hbm_to_vmem [thread:$0]  %s212, 16, %s215, [#allocation7]
        $region20: #{tpu_custom_call.1} parent=11 // pred_fallthru
          _
        // Predicated region
        $region21: #{tpu_custom_call.1} parent=11 // pred_check
          %p218 = pneg %p145
        $region22: #{tpu_custom_call.1} parent=11 // pred_check_branch
          %220 = sbr.rel (%p218) target = $region24
        $region23: #{tpu_custom_call.1} parent=11 // pred_region
          %s222 = ssub.s32 16, 16
          %223 = vsyncadd [#allocation10], %s222
          %s224 = smul.addr %s29, 16
          %s225 = scalar_lea.hbm %s3, %s224
          %s227 = sshll.u32 [#allocation9], 4
          %s228 = int_to_ptr.vmem [resolvable:$true] %s227
          %230 = dma.hbm_to_vmem [thread:$0]  %s225, 16, %s228, [#allocation10]
        $region24: #{tpu_custom_call.1} parent=11 // pred_fallthru
          _
      $region12: #{tpu_custom_call.1} parent=5 // pred_fallthru
        _
      %p231 = scmp.lt.s32.totalorder %s18, 48
      // Predicated region
      $region25: #{tpu_custom_call.1} parent=5 // pred_check
        %p232 = pneg %p231
      $region26: #{tpu_custom_call.1} parent=5 // pred_check_branch
        %234 = sbr.rel (%p232) target = $region28
      $region27: #{tpu_custom_call.1} parent=5 // pred_region
        // Predicated region
        $region29: #{tpu_custom_call.1} parent=27 // pred_check
          %p235 = pneg %p59
        $region30: #{tpu_custom_call.1} parent=27 // pred_check_branch
          %237 = sbr.rel (%p235) target = $region32
        $region31: #{tpu_custom_call.1} parent=27 // pred_region
          %s238 = sand.u32 %s49, 1
          %s239 = scalar_lea.sflag [#allocation4], %s238
          %s240 = sand.u32 %s49, 1
          %s241 = smul.addr %s240, 128
          %s242 = scalar_lea.vmem [#allocation3], %s241
          %s243 = smul.u32 16, %s25
          %s244 = smul.u32 2, %s27
          %s246 = ssub.s32 2048, 2048
          %247 = vsyncadd %s239, %s246
          %s248 = smul.addr %s243, 2
          %s249 = sadd.s32 %s244, %s248
          %s250 = smul.addr %s249, 64
          %s251 = scalar_lea.hbm %s0, %s250
          %s252 = sshll.u32 %s242, 4
          %s253 = int_to_ptr.vmem [resolvable:$true] %s252
          %258 = dma.hbm_to_vmem [thread:$0]  %s251, 2048, %s253, %s239, 128, 128, 8
        $region32: #{tpu_custom_call.1} parent=27 // pred_fallthru
          _
      $region28: #{tpu_custom_call.1} parent=5 // pred_fallthru
        _
      %p259 = scmp.le.s32.totalorder 1, %s18
      %p260 = scmp.lt.s32.totalorder %s18, 49
      %p261 = pnand %p259, %p260
      %p262 = pneg %p261
      // Predicated region
      $region33: #{tpu_custom_call.1} parent=5 // pred_check
        _
      $region34: #{tpu_custom_call.1} parent=5 // pred_check_branch
        %264 = sbr.rel (%p261) target = $region36
      $region35: #{tpu_custom_call.1} parent=5 // pred_region
        %s265 = ssub.s32 %s18, 1
        %s266 = sand.u32 %s52, 1
        %s267 = scalar_lea.sflag [#allocation4], %s266
        %s268 = sand.u32 %s52, 1
        %s269 = smul.addr %s268, 128
        %s270 = scalar_lea.vmem [#allocation3], %s269
        // Predicated region
        $region37: #{tpu_custom_call.1} parent=35 // pred_check
          %p271 = pneg %p65
        $region38: #{tpu_custom_call.1} parent=35 // pred_check_branch
          %273 = sbr.rel (%p271) target = $region40
        $region39: #{tpu_custom_call.1} parent=35 // pred_region
          %274 = dma.done %s267, 2048
        $region40: #{tpu_custom_call.1} parent=35 // pred_fallthru
          _
        // Predicated region
        $region41: #{tpu_custom_call.1} parent=35 // pred_check
          %p275 = pneg %p93
        $region42: #{tpu_custom_call.1} parent=35 // pred_check_branch
          %277 = sbr.rel (%p275) target = $region44
        $region43: #{tpu_custom_call.1} parent=35 // pred_region
          %278 = dma.done [#allocation7], 2048
        $region44: #{tpu_custom_call.1} parent=35 // pred_fallthru
          _
        // Predicated region
        $region45: #{tpu_custom_call.1} parent=35 // pred_check
          %p279 = pneg %p119
        $region46: #{tpu_custom_call.1} parent=35 // pred_check_branch
          %281 = sbr.rel (%p279) target = $region48
        $region47: #{tpu_custom_call.1} parent=35 // pred_region
          %282 = dma.done [#allocation7], 16
        $region48: #{tpu_custom_call.1} parent=35 // pred_fallthru
          _
        // Predicated region
        $region49: #{tpu_custom_call.1} parent=35 // pred_check
          %p283 = pneg %p145
        $region50: #{tpu_custom_call.1} parent=35 // pred_check_branch
          %285 = sbr.rel (%p283) target = $region52
        $region51: #{tpu_custom_call.1} parent=35 // pred_region
          %286 = dma.done [#allocation10], 16
        $region52: #{tpu_custom_call.1} parent=35 // pred_fallthru
          _
        %s287 = sand.u32 %s52, 1
        %s288 = scalar_lea.sflag [#allocation4], %s287
        %s289 = sand.u32 %s52, 1
        %s290 = smul.addr %s289, 128
        %s291 = scalar_lea.vmem [#allocation3], %s290
        %p292 = pneg %p65
        %p293 = pneg %p62
        %p294 = pneg %p93
        %p295 = pneg %p90
        %p296 = pneg %p119
        %p297 = pneg %p116
        %p298 = pneg %p145
        %p299 = pneg %p142
        %p300 = pneg %p173
        %p301 = pneg %p170
        %s302 = sand.u32 %s160, 1
        %s303 = scalar_lea.sflag [#allocation5], %s302
        %s304 = sand.u32 %s160, 1
        %s305 = smul.addr %s304, 64
        %s306 = scalar_lea.vmem [#allocation11], %s305
        %s307 = smul.u32 16, %s28
        %s308 = smul.u32 2, %s30
        %s309 = smul.u32 32, %s30
        %s310 = smul.u32 16, %s28
        %p312 = scmp.eq.s32.totalorder %s30, 0
        // Predicated region
        $region53: #{tpu_custom_call.1} parent=35 // pred_check
          %p313 = pneg %p312
        $region54: #{tpu_custom_call.1} parent=35 // pred_check_branch
          %315 = sbr.rel (%p313) target = $region56
        $region55: #{tpu_custom_call.1} parent=35 // pred_region
          %316 = vst [vmem:[#allocation2] sm:$0xff] 0.0
          %317 = vst [vmem:[#allocation2 + $0x8] sm:$0xff] 0.0
          %318 = vst [vmem:[#allocation2 + $0x10] sm:$0xff] 0.0
          %319 = vst [vmem:[#allocation2 + $0x18] sm:$0xff] 0.0
          %320 = vst [vmem:[#allocation2 + $0x20] sm:$0xff] 0.0
          %321 = vst [vmem:[#allocation2 + $0x28] sm:$0xff] 0.0
          %322 = vst [vmem:[#allocation2 + $0x30] sm:$0xff] 0.0
          %323 = vst [vmem:[#allocation2 + $0x38] sm:$0xff] 0.0
          %324 = vst [vmem:[#allocation2 + $0x40] sm:$0xff] 0.0
          %325 = vst [vmem:[#allocation2 + $0x48] sm:$0xff] 0.0
          %326 = vst [vmem:[#allocation2 + $0x50] sm:$0xff] 0.0
          %327 = vst [vmem:[#allocation2 + $0x58] sm:$0xff] 0.0
          %328 = vst [vmem:[#allocation2 + $0x60] sm:$0xff] 0.0
          %329 = vst [vmem:[#allocation2 + $0x68] sm:$0xff] 0.0
          %330 = vst [vmem:[#allocation2 + $0x70] sm:$0xff] 0.0
          %331 = vst [vmem:[#allocation2 + $0x78] sm:$0xff] 0.0
        $region56: #{tpu_custom_call.1} parent=35 // pred_fallthru
          _
        %v332 = vld [vmem:[#allocation2] sm:$0xff]
        %v333 = vld [vmem:[#allocation2 + $0x8] sm:$0xff]
        %v334 = vld [vmem:[#allocation2 + $0x10] sm:$0xff]
        %v335 = vld [vmem:[#allocation2 + $0x18] sm:$0xff]
        %v336 = vld [vmem:[#allocation2 + $0x20] sm:$0xff]
        %v337 = vld [vmem:[#allocation2 + $0x28] sm:$0xff]
        %v338 = vld [vmem:[#allocation2 + $0x30] sm:$0xff]
        %v339 = vld [vmem:[#allocation2 + $0x38] sm:$0xff]
        %v340 = vld [vmem:[#allocation2 + $0x40] sm:$0xff]
        %v341 = vld [vmem:[#allocation2 + $0x48] sm:$0xff]
        %v342 = vld [vmem:[#allocation2 + $0x50] sm:$0xff]
        %v343 = vld [vmem:[#allocation2 + $0x58] sm:$0xff]
        %v344 = vld [vmem:[#allocation2 + $0x60] sm:$0xff]
        %v345 = vld [vmem:[#allocation2 + $0x68] sm:$0xff]
        %v346 = vld [vmem:[#allocation2 + $0x70] sm:$0xff]
        %v347 = vld [vmem:[#allocation2 + $0x78] sm:$0xff]
        %v348 = vld [vmem:[%s270] sm:$0xff]
        %v349 = vld [vmem:[%s270 + $0x8] sm:$0xff]
        %v350 = vld [vmem:[%s270 + $0x10] sm:$0xff]
        %v351 = vld [vmem:[%s270 + $0x18] sm:$0xff]
        %v352 = vld [vmem:[%s270 + $0x20] sm:$0xff]
        %v353 = vld [vmem:[%s270 + $0x28] sm:$0xff]
        %v354 = vld [vmem:[%s270 + $0x30] sm:$0xff]
        %v355 = vld [vmem:[%s270 + $0x38] sm:$0xff]
        %v356 = vld [vmem:[%s270 + $0x40] sm:$0xff]
        %v357 = vld [vmem:[%s270 + $0x48] sm:$0xff]
        %v358 = vld [vmem:[%s270 + $0x50] sm:$0xff]
        %v359 = vld [vmem:[%s270 + $0x58] sm:$0xff]
        %v360 = vld [vmem:[%s270 + $0x60] sm:$0xff]
        %v361 = vld [vmem:[%s270 + $0x68] sm:$0xff]
        %v362 = vld [vmem:[%s270 + $0x70] sm:$0xff]
        %v363 = vld [vmem:[%s270 + $0x78] sm:$0xff]
        %v364 = vld [vmem:[#allocation6] sm:$0xf]
        %v365 = vld [vmem:[#allocation6 + $0x4] sm:$0xf]
        %v366 = vld [vmem:[#allocation6 + $0x8] sm:$0xf]
        %v367 = vld [vmem:[#allocation6 + $0xc] sm:$0xf]
        %v368 = vld [vmem:[#allocation6 + $0x10] sm:$0xf]
        %v369 = vld [vmem:[#allocation6 + $0x14] sm:$0xf]
        %v370 = vld [vmem:[#allocation6 + $0x18] sm:$0xf]
        %v371 = vld [vmem:[#allocation6 + $0x1c] sm:$0xf]
        %v372 = vld [vmem:[#allocation6 + $0x20] sm:$0xf]
        %v373 = vld [vmem:[#allocation6 + $0x24] sm:$0xf]
        %v374 = vld [vmem:[#allocation6 + $0x28] sm:$0xf]
        %v375 = vld [vmem:[#allocation6 + $0x2c] sm:$0xf]
        %v376 = vld [vmem:[#allocation6 + $0x30] sm:$0xf]
        %v377 = vld [vmem:[#allocation6 + $0x34] sm:$0xf]
        %v378 = vld [vmem:[#allocation6 + $0x38] sm:$0xf]
        %v379 = vld [vmem:[#allocation6 + $0x3c] sm:$0xf]
        %v380 = vld [vmem:[#allocation6 + $0x40] sm:$0xf]
        %v381 = vld [vmem:[#allocation6 + $0x44] sm:$0xf]
        %v382 = vld [vmem:[#allocation6 + $0x48] sm:$0xf]
        %v383 = vld [vmem:[#allocation6 + $0x4c] sm:$0xf]
        %v384 = vld [vmem:[#allocation6 + $0x50] sm:$0xf]
        %v385 = vld [vmem:[#allocation6 + $0x54] sm:$0xf]
        %v386 = vld [vmem:[#allocation6 + $0x58] sm:$0xf]
        %v387 = vld [vmem:[#allocation6 + $0x5c] sm:$0xf]
        %v388 = vld [vmem:[#allocation6 + $0x60] sm:$0xf]
        %v389 = vld [vmem:[#allocation6 + $0x64] sm:$0xf]
        %v390 = vld [vmem:[#allocation6 + $0x68] sm:$0xf]
        %v391 = vld [vmem:[#allocation6 + $0x6c] sm:$0xf]
        %v392 = vld [vmem:[#allocation6 + $0x70] sm:$0xf]
        %v393 = vld [vmem:[#allocation6 + $0x74] sm:$0xf]
        %v394 = vld [vmem:[#allocation6 + $0x78] sm:$0xf]
        %v395 = vld [vmem:[#allocation6 + $0x7c] sm:$0xf]
        %v412 = vunpack.c.l.b16 %v348
        %v413 = vunpack.c.h.b16 %v348
        %v414 = vunpack.c.l.b16 %v349
        %v415 = vunpack.c.h.b16 %v349
        %v416 = vunpack.c.l.b16 %v350
        %v417 = vunpack.c.h.b16 %v350
        %v418 = vunpack.c.l.b16 %v351
        %v419 = vunpack.c.h.b16 %v351
        %v420 = vunpack.c.l.b16 %v352
        %v421 = vunpack.c.h.b16 %v352
        %v422 = vunpack.c.l.b16 %v353
        %v423 = vunpack.c.h.b16 %v353
        %v424 = vunpack.c.l.b16 %v354
        %v425 = vunpack.c.h.b16 %v354
        %v426 = vunpack.c.l.b16 %v355
        %v427 = vunpack.c.h.b16 %v355
        %v428 = vunpack.c.l.b16 %v356
        %v429 = vunpack.c.h.b16 %v356
        %v430 = vunpack.c.l.b16 %v357
        %v431 = vunpack.c.h.b16 %v357
        %v432 = vunpack.c.l.b16 %v358
        %v433 = vunpack.c.h.b16 %v358
        %v434 = vunpack.c.l.b16 %v359
        %v435 = vunpack.c.h.b16 %v359
        %v436 = vunpack.c.l.b16 %v360
        %v437 = vunpack.c.h.b16 %v360
        %v438 = vunpack.c.l.b16 %v361
        %v439 = vunpack.c.h.b16 %v361
        %v440 = vunpack.c.l.b16 %v362
        %v441 = vunpack.c.h.b16 %v362
        %v442 = vunpack.c.l.b16 %v363
        %v443 = vunpack.c.h.b16 %v363
        %v444 = vpack.c.b16 %v414, %v412
        %v445 = vpack.c.b16 %v415, %v413
        %v446 = vpack.c.b16 %v418, %v416
        %v447 = vpack.c.b16 %v419, %v417
        %v448 = vpack.c.b16 %v422, %v420
        %v449 = vpack.c.b16 %v423, %v421
        %v450 = vpack.c.b16 %v426, %v424
        %v451 = vpack.c.b16 %v427, %v425
        %v452 = vpack.c.b16 %v430, %v428
        %v453 = vpack.c.b16 %v431, %v429
        %v454 = vpack.c.b16 %v434, %v432
        %v455 = vpack.c.b16 %v435, %v433
        %v456 = vpack.c.b16 %v438, %v436
        %v457 = vpack.c.b16 %v439, %v437
        %v458 = vpack.c.b16 %v442, %v440
        %v459 = vpack.c.b16 %v443, %v441
        %v508 = vunpack.c.l.b16 %v364
        %v509 = vunpack.c.l.b16 %v365
        %v510 = vunpack.c.l.b16 %v366
        %v511 = vunpack.c.l.b16 %v367
        %v512 = vunpack.c.l.b16 %v368
        %v513 = vunpack.c.l.b16 %v369
        %v514 = vunpack.c.l.b16 %v370
        %v515 = vunpack.c.l.b16 %v371
        %v516 = vunpack.c.l.b16 %v372
        %v517 = vunpack.c.l.b16 %v373
        %v518 = vunpack.c.l.b16 %v374
        %v519 = vunpack.c.l.b16 %v375
        %v520 = vunpack.c.l.b16 %v376
        %v521 = vunpack.c.l.b16 %v377
        %v522 = vunpack.c.l.b16 %v378
        %v523 = vunpack.c.l.b16 %v379
        %v524 = vunpack.c.l.b16 %v380
        %v525 = vunpack.c.l.b16 %v381
        %v526 = vunpack.c.l.b16 %v382
        %v527 = vunpack.c.l.b16 %v383
        %v528 = vunpack.c.l.b16 %v384
        %v529 = vunpack.c.l.b16 %v385
        %v530 = vunpack.c.l.b16 %v386
        %v531 = vunpack.c.l.b16 %v387
        %v532 = vunpack.c.l.b16 %v388
        %v533 = vunpack.c.l.b16 %v389
        %v534 = vunpack.c.l.b16 %v390
        %v535 = vunpack.c.l.b16 %v391
        %v536 = vunpack.c.l.b16 %v392
        %v537 = vunpack.c.l.b16 %v393
        %v538 = vunpack.c.l.b16 %v394
        %v539 = vunpack.c.l.b16 %v395
        %v540 = vpack.c.b16 %v509, %v508
        %v541 = vpack.c.b16 %v511, %v510
        %v542 = vpack.c.b16 %v513, %v512
        %v543 = vpack.c.b16 %v515, %v514
        %v544 = vpack.c.b16 %v517, %v516
        %v545 = vpack.c.b16 %v519, %v518
        %v546 = vpack.c.b16 %v521, %v520
        %v547 = vpack.c.b16 %v523, %v522
        %v548 = vpack.c.b16 %v525, %v524
        %v549 = vpack.c.b16 %v527, %v526
        %v550 = vpack.c.b16 %v529, %v528
        %v551 = vpack.c.b16 %v531, %v530
        %v552 = vpack.c.b16 %v533, %v532
        %v553 = vpack.c.b16 %v535, %v534
        %v554 = vpack.c.b16 %v537, %v536
        %v555 = vpack.c.b16 %v539, %v538
        %572 = vmatprep.subr.bf16.mxu0 0
        %573 = vmatpush1.bf16.msra.mxu0 %v540
        %574 = vmatprep.subr.bf16.mxu0 0
        %575 = vmatpush1.bf16.msra.mxu0 %v541
        %576 = vmatprep.subr.bf16.mxu0 0
        %577 = vmatpush1.bf16.msra.mxu0 %v542
        %578 = vmatprep.subr.bf16.mxu0 0
        %579 = vmatpush1.bf16.msra.mxu0 %v543
        %580 = vmatprep.subr.bf16.mxu0 0
        %581 = vmatpush1.bf16.msra.mxu0 %v544
        %582 = vmatprep.subr.bf16.mxu0 0
        %583 = vmatpush1.bf16.msra.mxu0 %v545
        %584 = vmatprep.subr.bf16.mxu0 0
        %585 = vmatpush1.bf16.msra.mxu0 %v546
        %586 = vmatprep.subr.bf16.mxu0 0
        %587 = vmatpush1.bf16.msra.mxu0 %v547
        %588 = vmatprep.subr.bf16.mxu0 0
        %589 = vmatpush1.bf16.msra.mxu0 %v548
        %590 = vmatprep.subr.bf16.mxu0 0
        %591 = vmatpush1.bf16.msra.mxu0 %v549
        %592 = vmatprep.subr.bf16.mxu0 0
        %593 = vmatpush1.bf16.msra.mxu0 %v550
        %594 = vmatprep.subr.bf16.mxu0 0
        %595 = vmatpush1.bf16.msra.mxu0 %v551
        %596 = vmatprep.subr.bf16.mxu0 0
        %597 = vmatpush1.bf16.msra.mxu0 %v552
        %598 = vmatprep.subr.bf16.mxu0 0
        %599 = vmatpush1.bf16.msra.mxu0 %v553
        %600 = vmatprep.subr.bf16.mxu0 0
        %601 = vmatpush1.bf16.msra.mxu0 %v554
        %602 = vmatprep.subr.bf16.mxu0 0
        %603 = vmatpush1.bf16.msra.mxu0 %v555
        %604 = vmatprep.mubr.bf16.mxu0 %v445
        %605 = vmatmul.mubr.bf16.gmra.mrb[0].mxu0 %v444
        %v606 = vpop.f32.mrb[0].mxu0
        %v607 = vadd.f32 0.0, %v606
        %v608 = vpop.f32.mrb[0].mxu0
        %v609 = vpop.f32.mrb[0].mxu0
        %v610 = vadd.f32 0.0, %v609
        %v611 = vpop.f32.mrb[0].mxu0
        %612 = vmatprep.mubr.bf16.mxu0 %v447
        %613 = vmatmul.mubr.bf16.gmra.mrb[0].mxu0 %v446
        %v614 = vpop.f32.mrb[0].mxu0
        %v615 = vadd.f32 0.0, %v614
        %v616 = vpop.f32.mrb[0].mxu0
        %v617 = vpop.f32.mrb[0].mxu0
        %v618 = vadd.f32 0.0, %v617
        %v619 = vpop.f32.mrb[0].mxu0
        %620 = vmatprep.mubr.bf16.mxu0 %v449
        %621 = vmatmul.mubr.bf16.gmra.mrb[0].mxu0 %v448
        %v622 = vpop.f32.mrb[0].mxu0
        %v623 = vadd.f32 0.0, %v622
        %v624 = vpop.f32.mrb[0].mxu0
        %v625 = vpop.f32.mrb[0].mxu0
        %v626 = vadd.f32 0.0, %v625
        %v627 = vpop.f32.mrb[0].mxu0
        %628 = vmatprep.mubr.bf16.mxu0 %v451
        %629 = vmatmul.mubr.bf16.gmra.mrb[0].mxu0 %v450
        %v630 = vpop.f32.mrb[0].mxu0
        %v631 = vadd.f32 0.0, %v630
        %v632 = vpop.f32.mrb[0].mxu0
        %v633 = vpop.f32.mrb[0].mxu0
        %v634 = vadd.f32 0.0, %v633
        %v635 = vpop.f32.mrb[0].mxu0
        %636 = vmatprep.mubr.bf16.mxu0 %v453
        %637 = vmatmul.mubr.bf16.gmra.mrb[0].mxu0 %v452
        %v638 = vpop.f32.mrb[0].mxu0
        %v639 = vadd.f32 0.0, %v638
        %v640 = vpop.f32.mrb[0].mxu0
        %v641 = vpop.f32.mrb[0].mxu0
        %v642 = vadd.f32 0.0, %v641
        %v643 = vpop.f32.mrb[0].mxu0
        %644 = vmatprep.mubr.bf16.mxu0 %v455
        %645 = vmatmul.mubr.bf16.gmra.mrb[0].mxu0 %v454
        %v646 = vpop.f32.mrb[0].mxu0
        %v647 = vadd.f32 0.0, %v646
        %v648 = vpop.f32.mrb[0].mxu0
        %v649 = vpop.f32.mrb[0].mxu0
        %v650 = vadd.f32 0.0, %v649
        %v651 = vpop.f32.mrb[0].mxu0
        %652 = vmatprep.mubr.bf16.mxu0 %v457
        %653 = vmatmul.mubr.bf16.gmra.mrb[0].mxu0 %v456
        %v654 = vpop.f32.mrb[0].mxu0
        %v655 = vadd.f32 0.0, %v654
        %v656 = vpop.f32.mrb[0].mxu0
        %v657 = vpop.f32.mrb[0].mxu0
        %v658 = vadd.f32 0.0, %v657
        %v659 = vpop.f32.mrb[0].mxu0
        %660 = vmatprep.mubr.bf16.mxu0 %v459
        %661 = vmatmul.mubr.bf16.gmra.mrb[0].mxu0 %v458
        %v662 = vpop.f32.mrb[0].mxu0
        %v663 = vadd.f32 0.0, %v662
        %v664 = vpop.f32.mrb[0].mxu0
        %v665 = vpop.f32.mrb[0].mxu0
        %v666 = vadd.f32 0.0, %v665
        %v667 = vpop.f32.mrb[0].mxu0
        %668 = vdwg.mxu0
        %v669 = vadd.f32 %v332, %v607
        %v670 = vadd.f32 %v333, %v610
        %v671 = vadd.f32 %v334, %v615
        %v672 = vadd.f32 %v335, %v618
        %v673 = vadd.f32 %v336, %v623
        %v674 = vadd.f32 %v337, %v626
        %v675 = vadd.f32 %v338, %v631
        %v676 = vadd.f32 %v339, %v634
        %v677 = vadd.f32 %v340, %v639
        %v678 = vadd.f32 %v341, %v642
        %v679 = vadd.f32 %v342, %v647
        %v680 = vadd.f32 %v343, %v650
        %v681 = vadd.f32 %v344, %v655
        %v682 = vadd.f32 %v345, %v658
        %v683 = vadd.f32 %v346, %v663
        %v684 = vadd.f32 %v347, %v666
        %685 = vst [vmem:[#allocation2] sm:$0xff] %v669
        %686 = vst [vmem:[#allocation2 + $0x8] sm:$0xff] %v670
        %687 = vst [vmem:[#allocation2 + $0x10] sm:$0xff] %v671
        %688 = vst [vmem:[#allocation2 + $0x18] sm:$0xff] %v672
        %689 = vst [vmem:[#allocation2 + $0x20] sm:$0xff] %v673
        %690 = vst [vmem:[#allocation2 + $0x28] sm:$0xff] %v674
        %691 = vst [vmem:[#allocation2 + $0x30] sm:$0xff] %v675
        %692 = vst [vmem:[#allocation2 + $0x38] sm:$0xff] %v676
        %693 = vst [vmem:[#allocation2 + $0x40] sm:$0xff] %v677
        %694 = vst [vmem:[#allocation2 + $0x48] sm:$0xff] %v678
        %695 = vst [vmem:[#allocation2 + $0x50] sm:$0xff] %v679
        %696 = vst [vmem:[#allocation2 + $0x58] sm:$0xff] %v680
        %697 = vst [vmem:[#allocation2 + $0x60] sm:$0xff] %v681
        %698 = vst [vmem:[#allocation2 + $0x68] sm:$0xff] %v682
        %699 = vst [vmem:[#allocation2 + $0x70] sm:$0xff] %v683
        %700 = vst [vmem:[#allocation2 + $0x78] sm:$0xff] %v684
        // Predicated region
        $region57: #{tpu_custom_call.1} parent=35 // pred_check
          %p701 = pneg %p312
        $region58: #{tpu_custom_call.1} parent=35 // pred_check_branch
          %703 = sbr.rel (%p701) target = $region60
        $region59: #{tpu_custom_call.1} parent=35 // pred_region
          %v704 = vld [vmem:[#allocation2] sm:$0xff]
          %v705 = vld [vmem:[#allocation2 + $0x8] sm:$0xff]
          %v706 = vld [vmem:[#allocation2 + $0x10] sm:$0xff]
          %v707 = vld [vmem:[#allocation2 + $0x18] sm:$0xff]
          %v708 = vld [vmem:[#allocation2 + $0x20] sm:$0xff]
          %v709 = vld [vmem:[#allocation2 + $0x28] sm:$0xff]
          %v710 = vld [vmem:[#allocation2 + $0x30] sm:$0xff]
          %v711 = vld [vmem:[#allocation2 + $0x38] sm:$0xff]
          %v712 = vld [vmem:[#allocation2 + $0x40] sm:$0xff]
          %v713 = vld [vmem:[#allocation2 + $0x48] sm:$0xff]
          %v714 = vld [vmem:[#allocation2 + $0x50] sm:$0xff]
          %v715 = vld [vmem:[#allocation2 + $0x58] sm:$0xff]
          %v716 = vld [vmem:[#allocation2 + $0x60] sm:$0xff]
          %v717 = vld [vmem:[#allocation2 + $0x68] sm:$0xff]
          %v718 = vld [vmem:[#allocation2 + $0x70] sm:$0xff]
          %v719 = vld [vmem:[#allocation2 + $0x78] sm:$0xff]
          %v720 = vld [vmem:[#allocation8] sm:$0x1]
          %v722 = vlaneseq
          %v723 = vshrl.u32 %v722, 7
          %v724 = vsub.s32 0, %v723
          %v725 = vrot.slane %v720, %v724
          %v727 = vmul.f32 %v704, %v725
          %v728 = vmul.f32 %v705, %v725
          %v729 = vmul.f32 %v706, %v725
          %v730 = vmul.f32 %v707, %v725
          %v731 = vmul.f32 %v708, %v725
          %v732 = vmul.f32 %v709, %v725
          %v733 = vmul.f32 %v710, %v725
          %v734 = vmul.f32 %v711, %v725
          %v735 = vmul.f32 %v712, %v725
          %v736 = vmul.f32 %v713, %v725
          %v737 = vmul.f32 %v714, %v725
          %v738 = vmul.f32 %v715, %v725
          %v739 = vmul.f32 %v716, %v725
          %v740 = vmul.f32 %v717, %v725
          %v741 = vmul.f32 %v718, %v725
          %v742 = vmul.f32 %v719, %v725
          %v743 = vld [vmem:[#allocation9] sm:$0x1]
          %v745 = vlaneseq
          %v746 = vshrl.u32 %v745, 7
          %v747 = vsub.s32 0, %v746
          %v748 = vrot.slane %v743, %v747
          %v750 = vadd.f32 %v727, %v748
          %v751 = vadd.f32 %v728, %v748
          %v752 = vadd.f32 %v729, %v748
          %v753 = vadd.f32 %v730, %v748
          %v754 = vadd.f32 %v731, %v748
          %v755 = vadd.f32 %v732, %v748
          %v756 = vadd.f32 %v733, %v748
          %v757 = vadd.f32 %v734, %v748
          %v758 = vadd.f32 %v735, %v748
          %v759 = vadd.f32 %v736, %v748
          %v760 = vadd.f32 %v737, %v748
          %v761 = vadd.f32 %v738, %v748
          %v762 = vadd.f32 %v739, %v748
          %v763 = vadd.f32 %v740, %v748
          %v764 = vadd.f32 %v741, %v748
          %v765 = vadd.f32 %v742, %v748
          %v766 = vmax.f32 %v750, 0.0
          %v767 = vmax.f32 %v751, 0.0
          %v768 = vmax.f32 %v752, 0.0
          %v769 = vmax.f32 %v753, 0.0
          %v770 = vmax.f32 %v754, 0.0
          %v771 = vmax.f32 %v755, 0.0
          %v772 = vmax.f32 %v756, 0.0
          %v773 = vmax.f32 %v757, 0.0
          %v774 = vmax.f32 %v758, 0.0
          %v775 = vmax.f32 %v759, 0.0
          %v776 = vmax.f32 %v760, 0.0
          %v777 = vmax.f32 %v761, 0.0
          %v778 = vmax.f32 %v762, 0.0
          %v779 = vmax.f32 %v763, 0.0
          %v780 = vmax.f32 %v764, 0.0
          %v781 = vmax.f32 %v765, 0.0
          %v782 = vpack.c.bf16 %v767, %v766
          %v783 = vpack.c.bf16 %v769, %v768
          %v784 = vpack.c.bf16 %v771, %v770
          %v785 = vpack.c.bf16 %v773, %v772
          %v786 = vpack.c.bf16 %v775, %v774
          %v787 = vpack.c.bf16 %v777, %v776
          %v788 = vpack.c.bf16 %v779, %v778
          %v789 = vpack.c.bf16 %v781, %v780
          %v798 = vunpack.c.l.b16 %v782
          %v799 = vunpack.c.h.b16 %v782
          %v800 = vunpack.c.l.b16 %v783
          %v801 = vunpack.c.h.b16 %v783
          %v802 = vunpack.c.l.b16 %v784
          %v803 = vunpack.c.h.b16 %v784
          %v804 = vunpack.c.l.b16 %v785
          %v805 = vunpack.c.h.b16 %v785
          %v806 = vunpack.c.l.b16 %v786
          %v807 = vunpack.c.h.b16 %v786
          %v808 = vunpack.c.l.b16 %v787
          %v809 = vunpack.c.h.b16 %v787
          %v810 = vunpack.c.l.b16 %v788
          %v811 = vunpack.c.h.b16 %v788
          %v812 = vunpack.c.l.b16 %v789
          %v813 = vunpack.c.h.b16 %v789
          %v814 = vpack.c.b16 %v798, %v798
          %v815 = vpack.c.b16 %v799, %v799
          %v816 = vpack.c.b16 %v800, %v800
          %v817 = vpack.c.b16 %v801, %v801
          %v818 = vpack.c.b16 %v802, %v802
          %v819 = vpack.c.b16 %v803, %v803
          %v820 = vpack.c.b16 %v804, %v804
          %v821 = vpack.c.b16 %v805, %v805
          %v822 = vpack.c.b16 %v806, %v806
          %v823 = vpack.c.b16 %v807, %v807
          %v824 = vpack.c.b16 %v808, %v808
          %v825 = vpack.c.b16 %v809, %v809
          %v826 = vpack.c.b16 %v810, %v810
          %v827 = vpack.c.b16 %v811, %v811
          %v828 = vpack.c.b16 %v812, %v812
          %v829 = vpack.c.b16 %v813, %v813
          %846 = vst [vmem:[%s306] sm:$0xf] %v814
          %847 = vst [vmem:[%s306 + $0x4] sm:$0xf] %v815
          %848 = vst [vmem:[%s306 + $0x8] sm:$0xf] %v816
          %849 = vst [vmem:[%s306 + $0xc] sm:$0xf] %v817
          %850 = vst [vmem:[%s306 + $0x10] sm:$0xf] %v818
          %851 = vst [vmem:[%s306 + $0x14] sm:$0xf] %v819
          %852 = vst [vmem:[%s306 + $0x18] sm:$0xf] %v820
          %853 = vst [vmem:[%s306 + $0x1c] sm:$0xf] %v821
          %854 = vst [vmem:[%s306 + $0x20] sm:$0xf] %v822
          %855 = vst [vmem:[%s306 + $0x24] sm:$0xf] %v823
          %856 = vst [vmem:[%s306 + $0x28] sm:$0xf] %v824
          %857 = vst [vmem:[%s306 + $0x2c] sm:$0xf] %v825
          %858 = vst [vmem:[%s306 + $0x30] sm:$0xf] %v826
          %859 = vst [vmem:[%s306 + $0x34] sm:$0xf] %v827
          %860 = vst [vmem:[%s306 + $0x38] sm:$0xf] %v828
          %861 = vst [vmem:[%s306 + $0x3c] sm:$0xf] %v829
        $region60: #{tpu_custom_call.1} parent=35 // pred_fallthru
          _
        %s862 = sand.u32 %s160, 1
        %s863 = scalar_lea.sflag [#allocation5], %s862
        %s864 = sand.u32 %s160, 1
        %s865 = smul.addr %s864, 64
        %s866 = scalar_lea.vmem [#allocation11], %s865
        // Predicated region
        $region61: #{tpu_custom_call.1} parent=35 // pred_check
          %p867 = pneg %p170
        $region62: #{tpu_custom_call.1} parent=35 // pred_check_branch
          %869 = sbr.rel (%p867) target = $region64
        $region63: #{tpu_custom_call.1} parent=35 // pred_region
          %s870 = smul.u32 16, %s28
          %s872 = ssub.s32 1024, 1024
          %873 = vsyncadd %s863, %s872
          %s874 = sadd.s32 %s29, %s870
          %s875 = smul.addr %s874, 64
          %s876 = scalar_lea.hbm %s4, %s875
          %s877 = sshll.u32 %s866, 4
          %s878 = int_to_ptr.vmem [resolvable:$true] %s877
          %883 = dma.vmem_to_hbm [thread:$0]  %s878, 1024, %s876, %s863, 64, 64, 4
        $region64: #{tpu_custom_call.1} parent=35 // pred_fallthru
          _
      $region36: #{tpu_custom_call.1} parent=5 // pred_fallthru
        _
      %p884 = scmp.le.s32.totalorder 2, %s18
      // Predicated region
      $region65: #{tpu_custom_call.1} parent=5 // pred_check
        %p885 = pneg %p884
      $region66: #{tpu_custom_call.1} parent=5 // pred_check_branch
        %887 = sbr.rel (%p885) target = $region68
      $region67: #{tpu_custom_call.1} parent=5 // pred_region
        %s888 = ssub.s32 %s18, 2
        // Predicated region
        $region69: #{tpu_custom_call.1} parent=67 // pred_check
          %p889 = pneg %p176
        $region70: #{tpu_custom_call.1} parent=67 // pred_check_branch
          %891 = sbr.rel (%p889) target = $region72
        $region71: #{tpu_custom_call.1} parent=67 // pred_region
          %s892 = sand.u32 %s161, 1
          %s893 = scalar_lea.sflag [#allocation5], %s892
          %s894 = sand.u32 %s161, 1
          %s895 = smul.addr %s894, 64
          %s896 = scalar_lea.vmem [#allocation11], %s895
          %897 = dma.done %s893, 1024
        $region72: #{tpu_custom_call.1} parent=67 // pred_fallthru
          _
      $region68: #{tpu_custom_call.1} parent=5 // pred_fallthru
        _
    $region6: #{tpu_custom_call.1} parent=1 // loop_footer
      %s22 = sadd.s32 1, %s18
    $region7: #{tpu_custom_call.1} parent=1 // loop_footer_branch
      %17 = sbr.rel target = $region3
    $region8: #{tpu_custom_call.1} parent=1 // loop_exit
      _
    %898 = vsyncpa [#allocation4], 1
    %s899 = scalar_lea.sflag [#allocation4], 1
    %900 = vsyncpa %s899, 1
    %901 = vsyncpa [#allocation7], 1
    %902 = vsyncpa [#allocation10], 1
    %903 = vsyncpa [#allocation5], 1
    %s904 = scalar_lea.sflag [#allocation5], 1
    %905 = vsyncpa %s904, 1

</llo_original>
